<compile_context>
chip_gen: v7x
topology: tpu7x:2x2x1
jax: 0.10.0
libtpu: 0.0.40
codegen_flags: <defaults>
</compile_context>

<pallas_src>
import functools

import jax
import jax.numpy as jnp
from jax.experimental import pallas as pl
from jax.experimental.pallas import tpu as pltpu


def _upsample_conv_kernel(x_ref, w_ref, b_ref, o_ref, *, th, W):
    # x_ref: (th*W, Cin)   w_ref: (Cin, 2*Cout)   b_ref: (1, 2*Cout)
    # o_ref: (th, 2*W, 2*Cout) -- dim0 = input row h, dim1 = (a, w), dim2 = (b, c)
    # 1x1 conv (+ folded BN scale) on the MXU, f32 accumulate.
    y = jnp.dot(x_ref[...], w_ref[...], preferred_element_type=jnp.float32)
    y = y + b_ref[...]                 # folded BN bias (already lane-duplicated)
    y = jnp.maximum(y, 0.1 * y)        # LeakyReLU(0.1) in f32 (single VPU max)
    y = y.astype(o_ref.dtype)
    # (th*W, 2*Cout) -> (th, W, 2*Cout): W % 8 == 0 so this split is tile-aligned.
    y = y.reshape(th, W, y.shape[-1])
    # 2x nearest upsample:
    #  * width duplication already lives in the lane axis (w_ref = [w_eff | w_eff]),
    #  * height duplication = two dense, sublane-aligned stores (ho = 2h, 2h+1).
    o_ref[:, 0:W, :] = y
    o_ref[:, W:2 * W, :] = y


def _pick_row_tile(n_rows, W, Cin, Cout, in_itemsize, out_itemsize,
                   vmem_budget_bytes=16 * 1024 * 1024, max_pixels=2048):
    """Input image rows processed per grid step (always a divisor of n_rows)."""
    # Double-buffered input block + output block per step.
    bytes_per_row = 2 * (W * Cin * in_itemsize + 2 * W * 2 * Cout * out_itemsize)
    cap = max(1, vmem_budget_bytes // bytes_per_row)
    cap = min(cap, max(1, max_pixels // W))        # keep the matmul M dim modest
    cap = min(cap, max(1, n_rows // 2))            # >= 2 grid steps when possible
    th = 1
    for d in range(1, int(cap) + 1):
        if n_rows % d == 0:
            th = d
    return th


def upsample_forward(x_nchw, conv_w, bn_gamma, bn_beta, bn_mean, bn_var,
                     *, eps=1e-5, out_dtype=None):
    """conv2d(1x1, bias=False) -> BatchNorm2d (inference, folded) ->
       LeakyReLU(0.1) -> nn.Upsample(scale_factor=2, mode='nearest'); NCHW in/out."""
    N, Cin, H, W = x_nchw.shape
    Cout = conv_w.shape[0]
    out_dtype = x_nchw.dtype if out_dtype is None else out_dtype

    # Fold BN (inference) into the 1x1 conv, and bake the 2x width duplication
    # into the weight/bias lane axis: columns are [b=0 copy | b=1 copy].
    scale = bn_gamma / jnp.sqrt(bn_var + eps)                   # (Cout,)
    w_eff = (conv_w * scale[:, None]).T                         # (Cin, Cout)
    b_eff = bn_beta - bn_mean * scale                           # (Cout,)
    w_dup = jnp.concatenate([w_eff, w_eff], axis=1)             # (Cin, 2*Cout)
    b_dup = jnp.concatenate([b_eff, b_eff]).reshape(1, 2 * Cout)

    # NCHW -> NHWC (the only pre-kernel pass over the input).  Widths that are
    # not sublane (8) aligned (e.g. 13x13 / 26x26 YOLO heads) are zero-padded
    # up to the next multiple of 8; padded columns are sliced off the output.
    x_nhwc = jnp.transpose(x_nchw, (0, 2, 3, 1))                # (N, H, W, Cin)
    Wp = W if W % 8 == 0 else ((W + 7) // 8) * 8
    if Wp != W:
        x_nhwc = jnp.pad(x_nhwc, ((0, 0), (0, 0), (0, Wp - W), (0, 0)))
    x2d = x_nhwc.reshape(N * H * Wp, Cin)                       # flat pixel rows

    n_rows = N * H
    M = N * H * Wp
    in_itemsize = int(jnp.dtype(x2d.dtype).itemsize)
    out_itemsize = int(jnp.dtype(out_dtype).itemsize)
    th = _pick_row_tile(n_rows, Wp, Cin, Cout, in_itemsize, out_itemsize)

    cost = pl.CostEstimate(
        flops=2 * M * Cin * 2 * Cout,
        transcendentals=0,
        bytes_accessed=int(M * Cin * in_itemsize
                           + 4 * M * Cout * out_itemsize
                           + Cin * 2 * Cout * int(jnp.dtype(w_dup.dtype).itemsize)
                           + 2 * Cout * int(jnp.dtype(b_dup.dtype).itemsize)))

    # Kernel output row-major order is (n, h, a, w, b, c), so a plain (free)
    # reshape below yields NHWC (N, 2H, 2Wp, Cout) with no data movement.
    out3 = pl.pallas_call(
        functools.partial(_upsample_conv_kernel, th=th, W=Wp),
        out_shape=jax.ShapeDtypeStruct((n_rows, 2 * Wp, 2 * Cout), out_dtype),
        grid=(n_rows // th,),
        in_specs=[
            pl.BlockSpec((th * Wp, Cin), lambda i: (i, 0)),
            pl.BlockSpec((Cin, 2 * Cout), lambda i: (0, 0)),
            pl.BlockSpec((1, 2 * Cout), lambda i: (0, 0)),
        ],
        out_specs=pl.BlockSpec((th, 2 * Wp, 2 * Cout), lambda i: (i, 0, 0)),
        compiler_params=pltpu.CompilerParams(
            dimension_semantics=("parallel",),
            vmem_limit_bytes=32 * 1024 * 1024),
        cost_estimate=cost,
    )(x2d, w_dup, b_dup)

    out_nhwc = out3.reshape(N, 2 * H, 2 * Wp, Cout)   # free row-major reshape
    if Wp != W:
        out_nhwc = out_nhwc[:, :, :2 * W, :]          # drop padded columns (fuses)
    # TODO(synk): the final NHWC->NCHW transpose stays in XLA; emitting NCHW
    # directly from the kernel would need a lane-interleave upsample path.
    return jnp.transpose(out_nhwc, (0, 3, 1, 2))      # single final NHWC -> NCHW


def _reference(x_nchw, conv_w, bn_gamma, bn_beta, bn_mean, bn_var, eps=1e-5):
    y = jnp.einsum('nchw,oc->nohw', x_nchw, conv_w)
    scale = (bn_gamma / jnp.sqrt(bn_var + eps))[None, :, None, None]
    y = (y - bn_mean[None, :, None, None]) * scale + bn_beta[None, :, None, None]
    y = jnp.where(y >= 0, y, 0.1 * y)
    y = jnp.repeat(jnp.repeat(y, 2, axis=2), 2, axis=3)
    return y


def _run_case(key, N, Cin, Cout, H, W):
    k_x, k_w, k_g, k_b, k_m, k_v = jax.random.split(key, 6)
    x = jax.random.normal(k_x, (N, Cin, H, W), dtype=jnp.float32)
    conv_w = jax.random.normal(k_w, (Cout, Cin), dtype=jnp.float32) * 0.1
    bn_gamma = 1.0 + 0.1 * jax.random.normal(k_g, (Cout,), dtype=jnp.float32)
    bn_beta = 0.1 * jax.random.normal(k_b, (Cout,), dtype=jnp.float32)
    bn_mean = 0.1 * jax.random.normal(k_m, (Cout,), dtype=jnp.float32)
    bn_var = jax.random.uniform(k_v, (Cout,), dtype=jnp.float32,
                                minval=0.5, maxval=1.5)

    out = upsample_forward(x, conv_w, bn_gamma, bn_beta, bn_mean, bn_var)
    out = jax.block_until_ready(out)

    ref = _reference(x, conv_w, bn_gamma, bn_beta, bn_mean, bn_var)
    assert out.shape == (N, Cout, 2 * H, 2 * W), out.shape
    assert jnp.allclose(out, ref, atol=1e-5, rtol=1e-5), "mismatch vs reference"


if __name__ == "__main__":
    key = jax.random.PRNGKey(0)
    k0, k1 = jax.random.split(key)
    # Sublane-aligned width path.
    _run_case(k0, N=2, Cin=4, Cout=8, H=16, W=16)
    # YOLO-style non-multiple-of-8 width path (padded-W kernel).
    _run_case(k1, N=1, Cin=4, Cout=8, H=13, W=13)
    print("KERNEL_OK")
</pallas_src>

<mosaic_0001>
module attributes {stable_mosaic.version = 11 : i64} {
  func.func @_upsample_conv_kernel(%arg0: i32, %arg1: memref<256x4xf32, #tpu.memory_space<vmem>>, %arg2: memref<4x16xf32, #tpu.memory_space<vmem>>, %arg3: memref<1x16xf32, #tpu.memory_space<vmem>>, %arg4: memref<16x32x16xf32, #tpu.memory_space<vmem>>) attributes {dimension_semantics = [#tpu.dimension_semantics<parallel>], iteration_bounds = array<i64: 2>, scalar_prefetch = 0 : i64, scratch_operands = 0 : i64, tpu.core_type = #tpu.core_type<tc>, window_params = [{transform_indices = @transform_0, window_bounds = array<i64: 256, 4>}, {pipeline_mode = #tpu.pipeline_mode<synchronous>, transform_indices = @transform_1, window_bounds = array<i64: 4, 16>}, {pipeline_mode = #tpu.pipeline_mode<synchronous>, transform_indices = @transform_2, window_bounds = array<i64: 1, 16>}, {transform_indices = @transform_3, window_bounds = array<i64: 16, 32, 16>}]} {
    %c0 = arith.constant 0 : index
    %c0_0 = arith.constant 0 : index
    %0 = vector.load %arg1[%c0, %c0_0] : memref<256x4xf32, #tpu.memory_space<vmem>>, vector<256x4xf32>
    %c0_1 = arith.constant 0 : index
    %c0_2 = arith.constant 0 : index
    %1 = vector.load %arg2[%c0_1, %c0_2] : memref<4x16xf32, #tpu.memory_space<vmem>>, vector<4x16xf32>
    %cst = arith.constant dense<0.000000e+00> : vector<256x16xf32>
    %2 = tpu.matmul %0, %1, %cst {dimension_numbers = #tpu.dot_dimension_numbers<[1], [0], [0], [1], [0, 0, 1, 1], [], []>} : vector<256x4xf32>, vector<4x16xf32>, vector<256x16xf32> -> vector<256x16xf32>
    %c0_3 = arith.constant 0 : index
    %c0_4 = arith.constant 0 : index
    %3 = vector.load %arg3[%c0_3, %c0_4] : memref<1x16xf32, #tpu.memory_space<vmem>>, vector<1x16xf32>
    %4 = vector.broadcast %3 : vector<1x16xf32> to vector<256x16xf32>
    %5 = arith.addf %2, %4 : vector<256x16xf32>
    %cst_5 = arith.constant 1.000000e-01 : f32
    %6 = vector.broadcast %cst_5 : f32 to vector<256x16xf32>
    %7 = arith.mulf %6, %5 : vector<256x16xf32>
    %8 = arith.maximumf %5, %7 : vector<256x16xf32>
    %9 = vector.shape_cast %8 : vector<256x16xf32> to vector<16x16x16xf32>
    %c0_6 = arith.constant 0 : index
    %c0_7 = arith.constant 0 : index
    %c0_8 = arith.constant 0 : index
    %10 = vector.load %arg4[%c0_6, %c0_7, %c0_8] : memref<16x32x16xf32, #tpu.memory_space<vmem>>, vector<16x16x16xf32>
    tpu.vector_store %arg4[%c0_6, %c0_7, %c0_8], %9 {strides = array<i32>} : memref<16x32x16xf32, #tpu.memory_space<vmem>>, vector<16x16x16xf32>,
    %c0_9 = arith.constant 0 : index
    %c16 = arith.constant 16 : index
    %c0_10 = arith.constant 0 : index
    %11 = vector.load %arg4[%c0_9, %c16, %c0_10] : memref<16x32x16xf32, #tpu.memory_space<vmem>>, vector<16x16x16xf32>
    tpu.vector_store %arg4[%c0_9, %c16, %c0_10], %9 {strides = array<i32>} : memref<16x32x16xf32, #tpu.memory_space<vmem>>, vector<16x16x16xf32>,
    return
  }
  func.func @transform_0(%arg0: i32) -> (i32, i32) {
    %c0_i32 = arith.constant 0 : i32
    %c0_i32_0 = arith.constant 0 : i32
    return %arg0, %c0_i32 : i32, i32
  }
  func.func @transform_1(%arg0: i32) -> (i32, i32) {
    %c0_i32 = arith.constant 0 : i32
    %c0_i32_0 = arith.constant 0 : i32
    %c0_i32_1 = arith.constant 0 : i32
    return %c0_i32, %c0_i32_0 : i32, i32
  }
  func.func @transform_2(%arg0: i32) -> (i32, i32) {
    %c0_i32 = arith.constant 0 : i32
    %c0_i32_0 = arith.constant 0 : i32
    %c0_i32_1 = arith.constant 0 : i32
    return %c0_i32, %c0_i32_0 : i32, i32
  }
  func.func @transform_3(%arg0: i32) -> (i32, i32, i32) {
    %c0_i32 = arith.constant 0 : i32
    %c0_i32_0 = arith.constant 0 : i32
    %c0_i32_1 = arith.constant 0 : i32
    return %arg0, %c0_i32, %c0_i32_0 : i32, i32, i32
  }
}

</mosaic_0001>

<llo_original>
// kernel: tpu_custom_call.1
$region0: #{tpu_custom_call.1}
  #allocation0 [shape = 'u32[]', space=smem, size = 0x4, offset = 0x4, fixed_abs, tag = 'smem constant byte address 0x4 - core index']
  #allocation1 [shape = 'u32[144,128]{1,0:T(1,128)}', space=vmem, size = 0x12000, scoped, tag = 'internal scratch']
  %s0 = inlined_call_operand.vmem [shape: f32[512,4], index: 0, kind: input, shape index: {}]
  %s1 = inlined_call_operand.vmem [shape: f32[4,16], index: 1, kind: input, shape index: {}]
  %s2 = inlined_call_operand.vmem [shape: f32[1,16], index: 2, kind: input, shape index: {}]
  %s3 = inlined_call_operand.vmem [shape: f32[32,32,16], index: 3, kind: output, shape index: {}]
  %s4 = sld [smem:[#allocation0]]
  $region45: #{tpu_custom_call.1} parent=0
    _
  %s6 = ssub.s32 1, %s4
  %s7 = scalar_select 0, %s6, %s4
  loop: start=0, step=1, limit=4
  $region2: #{tpu_custom_call.1} parent=0 // loop_pre_header
    _
  $region3: #{tpu_custom_call.1} parent=0 // loop_header
    %s9 = sphi 0, %s13
    %p10 = scmp.ge.s32.totalorder %s9, 4
    %s19 = sphi 0, %s21
    %s22 = sphi 0, %s19
    %s23 = sphi 0, %s22
    %s39 = sphi 0, %s23
    %s43 = sphi 0, %s43
    %s45 = sphi 0, %s43
    %s46 = sphi 0, %s45
    %s60 = sphi 0, %s46
    %s64 = sphi 0, %s64
    %s66 = sphi 0, %s64
    %s67 = sphi 0, %s66
    %s81 = sphi 0, %s67
    %s87 = sphi 0, %s89
    %s90 = sphi 0, %s87
    %s91 = sphi 0, %s90
    %s107 = sphi 0, %s91
  $region4: #{tpu_custom_call.1} parent=0 // loop_header_branch
    %12 = sbr.rel (%p10) target = $region8
  $region5: #{tpu_custom_call.1} parent=0 // loop_body
    %s14 = ssub.s32 %s9, 1
    %s15 = ssub.s32 %s9, 2
    %s16 = sadd.s32 %s9, 1
    %s17 = ssub.s32 %s9, %s16
    %p18 = scmp.eq.s32.totalorder %s17, 0
    %s20 = sadd.s32 %s19, 1
    %s21 = scalar_select %p18, %s19, %s20
    %p24 = pneg %p18
    %p25 = scmp.eq.s32.totalorder %s9, 1
    %p26 = por %p24, %p25
    %p27 = scmp.ne.s32.totalorder %s19, %s22
    %p28 = scmp.eq.s32.totalorder %s9, 0
    %p29 = por %p27, %p28
    %p30 = scmp.ne.s32.totalorder %s19, %s22
    %p31 = scmp.eq.s32.totalorder %s14, 1
    %p32 = por %p30, %p31
    %p33 = scmp.ne.s32.totalorder %s22, %s23
    %p34 = scmp.eq.s32.totalorder %s14, 0
    %p35 = por %p33, %p34
    %p36 = scmp.ne.s32.totalorder %s22, %s23
    %p37 = scmp.eq.s32.totalorder %s15, 1
    %p38 = por %p36, %p37
    %p40 = scmp.ne.s32.totalorder %s23, %s39
    %p41 = scmp.eq.s32.totalorder %s15, 0
    %p42 = por %p40, %p41
    %s44 = sadd.s32 %s43, 1
    %p47 = scmp.eq.s32.totalorder %s9, 1
    %p48 = scmp.ne.s32.totalorder %s43, %s45
    %p49 = scmp.eq.s32.totalorder %s9, 0
    %p50 = por %p48, %p49
    %p51 = scmp.ne.s32.totalorder %s43, %s45
    %p52 = scmp.eq.s32.totalorder %s14, 1
    %p53 = por %p51, %p52
    %p54 = scmp.ne.s32.totalorder %s45, %s46
    %p55 = scmp.eq.s32.totalorder %s14, 0
    %p56 = por %p54, %p55
    %p57 = scmp.ne.s32.totalorder %s45, %s46
    %p58 = scmp.eq.s32.totalorder %s15, 1
    %p59 = por %p57, %p58
    %p61 = scmp.ne.s32.totalorder %s46, %s60
    %p62 = scmp.eq.s32.totalorder %s15, 0
    %p63 = por %p61, %p62
    %s65 = sadd.s32 %s64, 1
    %p68 = scmp.eq.s32.totalorder %s9, 1
    %p69 = scmp.ne.s32.totalorder %s64, %s66
    %p70 = scmp.eq.s32.totalorder %s9, 0
    %p71 = por %p69, %p70
    %p72 = scmp.ne.s32.totalorder %s64, %s66
    %p73 = scmp.eq.s32.totalorder %s14, 1
    %p74 = por %p72, %p73
    %p75 = scmp.ne.s32.totalorder %s66, %s67
    %p76 = scmp.eq.s32.totalorder %s14, 0
    %p77 = por %p75, %p76
    %p78 = scmp.ne.s32.totalorder %s66, %s67
    %p79 = scmp.eq.s32.totalorder %s15, 1
    %p80 = por %p78, %p79
    %p82 = scmp.ne.s32.totalorder %s67, %s81
    %p83 = scmp.eq.s32.totalorder %s15, 0
    %p84 = por %p82, %p83
    %s85 = ssub.s32 %s9, %s16
    %p86 = scmp.eq.s32.totalorder %s85, 0
    %s88 = sadd.s32 %s87, 1
    %s89 = scalar_select %p86, %s87, %s88
    %p92 = pneg %p86
    %p93 = scmp.eq.s32.totalorder %s9, 1
    %p94 = por %p92, %p93
    %p95 = scmp.ne.s32.totalorder %s87, %s90
    %p96 = scmp.eq.s32.totalorder %s9, 0
    %p97 = por %p95, %p96
    %p98 = scmp.ne.s32.totalorder %s87, %s90
    %p99 = scmp.eq.s32.totalorder %s14, 1
    %p100 = por %p98, %p99
    %p101 = scmp.ne.s32.totalorder %s90, %s91
    %p102 = scmp.eq.s32.totalorder %s14, 0
    %p103 = por %p101, %p102
    %p104 = scmp.ne.s32.totalorder %s90, %s91
    %p105 = scmp.eq.s32.totalorder %s15, 1
    %p106 = por %p104, %p105
    %p108 = scmp.ne.s32.totalorder %s91, %s107
    %p109 = scmp.eq.s32.totalorder %s15, 0
    %p110 = por %p108, %p109
    %p111 = scmp.le.s32.totalorder 1, %s9
    %p112 = scmp.lt.s32.totalorder %s9, 3
    %p113 = pnand %p111, %p112
    %p114 = pneg %p113
    // Predicated region
    $region9: #{tpu_custom_call.1} parent=5 // pred_check
      _
    $region10: #{tpu_custom_call.1} parent=5 // pred_check_branch
      %116 = sbr.rel (%p113) target = $region12
    $region11: #{tpu_custom_call.1} parent=5 // pred_region
      %s117 = ssub.s32 %s9, 1
      // Predicated region
      $region13: #{tpu_custom_call.1} parent=11 // pred_check
        %p118 = pneg %p56
      $region14: #{tpu_custom_call.1} parent=11 // pred_check_branch
        %120 = sbr.rel (%p118) target = $region16
      $region15: #{tpu_custom_call.1} parent=11 // pred_region
        _
      $region16: #{tpu_custom_call.1} parent=11 // pred_fallthru
        _
      // Predicated region
      $region17: #{tpu_custom_call.1} parent=11 // pred_check
        %p121 = pneg %p77
      $region18: #{tpu_custom_call.1} parent=11 // pred_check_branch
        %123 = sbr.rel (%p121) target = $region20
      $region19: #{tpu_custom_call.1} parent=11 // pred_region
        _
      $region20: #{tpu_custom_call.1} parent=11 // pred_fallthru
        _
    $region12: #{tpu_custom_call.1} parent=5 // pred_fallthru
      _
    %p124 = scmp.lt.s32.totalorder %s9, 2
    // Predicated region
    $region21: #{tpu_custom_call.1} parent=5 // pred_check
      %p125 = pneg %p124
    $region22: #{tpu_custom_call.1} parent=5 // pred_check_branch
      %127 = sbr.rel (%p125) target = $region24
    $region23: #{tpu_custom_call.1} parent=5 // pred_region
      // Predicated region
      $region25: #{tpu_custom_call.1} parent=23 // pred_check
        %p128 = pneg %p29
      $region26: #{tpu_custom_call.1} parent=23 // pred_check_branch
        %130 = sbr.rel (%p128) target = $region28
      $region27: #{tpu_custom_call.1} parent=23 // pred_region
        %s131 = smul.u32 32, %s9
        %p132 = scmp.lt.s32.totalorder %s131, 63
        %s133 = scalar_select %p132, %s131, 63
        %s134 = smul.addr %s133, 8
        %s135 = scalar_lea.vmem %s0, %s134
        %s136 = smul.u32 32, %s9
      $region28: #{tpu_custom_call.1} parent=23 // pred_fallthru
        _
    $region24: #{tpu_custom_call.1} parent=5 // pred_fallthru
      _
    %p137 = scmp.le.s32.totalorder 1, %s9
    %p138 = scmp.lt.s32.totalorder %s9, 3
    %p139 = pnand %p137, %p138
    %p140 = pneg %p139
    // Predicated region
    $region29: #{tpu_custom_call.1} parent=5 // pred_check
      _
    $region30: #{tpu_custom_call.1} parent=5 // pred_check_branch
      %142 = sbr.rel (%p139) target = $region32
    $region31: #{tpu_custom_call.1} parent=5 // pred_region
      %s143 = ssub.s32 %s9, 1
      %s144 = smul.u32 32, %s14
      %p145 = scmp.lt.s32.totalorder %s144, 63
      %s146 = scalar_select %p145, %s144, 63
      %s147 = smul.addr %s146, 8
      %s148 = scalar_lea.vmem %s0, %s147
      %p149 = pneg %p35
      %p150 = pneg %p32
      %p151 = pneg %p56
      %p152 = pneg %p53
      %p153 = pneg %p77
      %p154 = pneg %p74
      %p155 = pneg %p103
      %p156 = pneg %p100
      %s157 = smul.u32 16, %s14
      %p158 = scmp.lt.s32.totalorder %s157, 31
      %s159 = scalar_select %p158, %s157, 31
      %s160 = smul.addr %s159, 4
      %s161 = smul.addr %s160, 8
      %s162 = scalar_lea.vmem %s3, %s161
      %s163 = smul.u32 32, %s14
      %p164 = scmp.lt.s32.totalorder %s163, 63
      %s165 = scalar_select %p164, %s163, 63
      %s166 = smul.addr %s165, 8
      %s167 = scalar_lea.vmem %s0, %s166
      %s168 = smul.u32 32, %s14
      %s169 = smul.u32 16, %s14
      %p170 = scmp.lt.s32.totalorder %s169, 31
      %s171 = scalar_select %p170, %s169, 31
      %s172 = smul.addr %s171, 4
      %s173 = smul.addr %s172, 8
      %s174 = scalar_lea.vmem %s3, %s173
      %s175 = smul.u32 16, %s14
      %v176 = vld [vmem:[%s167] sm:$0xff]
      %v177 = vld [vmem:[%s167 + $0x8] sm:$0xff]
      %v178 = vld [vmem:[%s167 + $0x10] sm:$0xff]
      %v179 = vld [vmem:[%s167 + $0x18] sm:$0xff]
      %v180 = vld [vmem:[%s167 + $0x20] sm:$0xff]
      %v181 = vld [vmem:[%s167 + $0x28] sm:$0xff]
      %v182 = vld [vmem:[%s167 + $0x30] sm:$0xff]
      %v183 = vld [vmem:[%s167 + $0x38] sm:$0xff]
      %v184 = vld [vmem:[%s167 + $0x40] sm:$0xff]
      %v185 = vld [vmem:[%s167 + $0x48] sm:$0xff]
      %v186 = vld [vmem:[%s167 + $0x50] sm:$0xff]
      %v187 = vld [vmem:[%s167 + $0x58] sm:$0xff]
      %v188 = vld [vmem:[%s167 + $0x60] sm:$0xff]
      %v189 = vld [vmem:[%s167 + $0x68] sm:$0xff]
      %v190 = vld [vmem:[%s167 + $0x70] sm:$0xff]
      %v191 = vld [vmem:[%s167 + $0x78] sm:$0xff]
      %v192 = vld [vmem:[%s167 + $0x80] sm:$0xff]
      %v193 = vld [vmem:[%s167 + $0x88] sm:$0xff]
      %v194 = vld [vmem:[%s167 + $0x90] sm:$0xff]
      %v195 = vld [vmem:[%s167 + $0x98] sm:$0xff]
      %v196 = vld [vmem:[%s167 + $0xa0] sm:$0xff]
      %v197 = vld [vmem:[%s167 + $0xa8] sm:$0xff]
      %v198 = vld [vmem:[%s167 + $0xb0] sm:$0xff]
      %v199 = vld [vmem:[%s167 + $0xb8] sm:$0xff]
      %v200 = vld [vmem:[%s167 + $0xc0] sm:$0xff]
      %v201 = vld [vmem:[%s167 + $0xc8] sm:$0xff]
      %v202 = vld [vmem:[%s167 + $0xd0] sm:$0xff]
      %v203 = vld [vmem:[%s167 + $0xd8] sm:$0xff]
      %v204 = vld [vmem:[%s167 + $0xe0] sm:$0xff]
      %v205 = vld [vmem:[%s167 + $0xe8] sm:$0xff]
      %v206 = vld [vmem:[%s167 + $0xf0] sm:$0xff]
      %v207 = vld [vmem:[%s167 + $0xf8] sm:$0xff]
      %v208 = vld [vmem:[%s1] sm:$0xf]
      %v209 = vld [vmem:[%s2] sm:$0x1]
      %v211 = vlaneseq
      %v212 = vshrl.u32 %v211, 7
      %v213 = vsub.s32 0, %v212
      %v214 = vrot.slane %v209, %v213
      %vm216 = vcmask 31744
      %v218 = vsel %vm216, %v176, 0
      %v221 = vsel %vm216, %v177, 0
      %v224 = vsel %vm216, %v178, 0
      %v227 = vsel %vm216, %v179, 0
      %v230 = vsel %vm216, %v180, 0
      %v233 = vsel %vm216, %v181, 0
      %v236 = vsel %vm216, %v182, 0
      %v239 = vsel %vm216, %v183, 0
      %v242 = vsel %vm216, %v184, 0
      %v245 = vsel %vm216, %v185, 0
      %v248 = vsel %vm216, %v186, 0
      %v251 = vsel %vm216, %v187, 0
      %v254 = vsel %vm216, %v188, 0
      %v257 = vsel %vm216, %v189, 0
      %v260 = vsel %vm216, %v190, 0
      %v263 = vsel %vm216, %v191, 0
      %v266 = vsel %vm216, %v192, 0
      %v269 = vsel %vm216, %v193, 0
      %v272 = vsel %vm216, %v194, 0
      %v275 = vsel %vm216, %v195, 0
      %v278 = vsel %vm216, %v196, 0
      %v281 = vsel %vm216, %v197, 0
      %v284 = vsel %vm216, %v198, 0
      %v287 = vsel %vm216, %v199, 0
      %v290 = vsel %vm216, %v200, 0
      %v293 = vsel %vm216, %v201, 0
      %v296 = vsel %vm216, %v202, 0
      %v299 = vsel %vm216, %v203, 0
      %v302 = vsel %vm216, %v204, 0
      %v305 = vsel %vm216, %v205, 0
      %v308 = vsel %vm216, %v206, 0
      %v311 = vsel %vm216, %v207, 0
      %vm313 = vcmask 1043456
      %v315 = vsel %vm313, %v208, 0
      %317 = vmatprep.subr.mxu0 0.0
      %318 = vmatpush1.msra.mxu0 %v315
      %319 = vmatprep.subr.mxu0 0.0
      %320 = vmatpush1.msra.mxu0 0.0
      %321 = vmatprep.subr.mxu0 0.0
      %322 = vmatpush1.msra.mxu0 0.0
      %323 = vmatprep.subr.mxu0 0.0
      %324 = vmatpush1.msra.mxu0 0.0
      %325 = vmatprep.subr.mxu0 0.0
      %326 = vmatpush1.msra.mxu0 0.0
      %327 = vmatprep.subr.mxu0 0.0
      %328 = vmatpush1.msra.mxu0 0.0
      %329 = vmatprep.subr.mxu0 0.0
      %330 = vmatpush1.msra.mxu0 0.0
      %331 = vmatprep.subr.mxu0 0.0
      %332 = vmatpush1.msra.mxu0 0.0
      %333 = vmatprep.subr.mxu0 0.0
      %334 = vmatpush1.msra.mxu0 0.0
      %335 = vmatprep.subr.mxu0 0.0
      %336 = vmatpush1.msra.mxu0 0.0
      %337 = vmatprep.subr.mxu0 0.0
      %338 = vmatpush1.msra.mxu0 0.0
      %339 = vmatprep.subr.mxu0 0.0
      %340 = vmatpush1.msra.mxu0 0.0
      %341 = vmatprep.subr.mxu0 0.0
      %342 = vmatpush1.msra.mxu0 0.0
      %343 = vmatprep.subr.mxu0 0.0
      %344 = vmatpush1.msra.mxu0 0.0
      %345 = vmatprep.subr.mxu0 0.0
      %346 = vmatpush1.msra.mxu0 0.0
      %347 = vmatprep.subr.mxu0 0.0
      %348 = vmatpush1.msra.mxu0 0.0
      %349 = vmatprep.subr.mxu0 0.0
      %350 = vmatpush1.msra.mxu0 0.0
      %351 = vmatprep.subr.mxu0 0.0
      %352 = vmatpush1.msra.mxu0 0.0
      %353 = vmatprep.subr.mxu0 0.0
      %354 = vmatpush1.msra.mxu0 0.0
      %355 = vmatprep.subr.mxu0 0.0
      %356 = vmatpush1.msra.mxu0 0.0
      %357 = vmatprep.subr.mxu0 0.0
      %358 = vmatpush1.msra.mxu0 0.0
      %359 = vmatprep.subr.mxu0 0.0
      %360 = vmatpush1.msra.mxu0 0.0
      %361 = vmatprep.subr.mxu0 0.0
      %362 = vmatpush1.msra.mxu0 0.0
      %363 = vmatprep.subr.mxu0 0.0
      %364 = vmatpush1.msra.mxu0 0.0
      %365 = vmatprep.subr.mxu0 0.0
      %366 = vmatpush1.msra.mxu0 0.0
      %367 = vmatprep.subr.mxu0 0.0
      %368 = vmatpush1.msra.mxu0 0.0
      %369 = vmatprep.subr.mxu0 0.0
      %370 = vmatpush1.msra.mxu0 0.0
      %371 = vmatprep.subr.mxu0 0.0
      %372 = vmatpush1.msra.mxu0 0.0
      %373 = vmatprep.subr.mxu0 0.0
      %374 = vmatpush1.msra.mxu0 0.0
      %375 = vmatprep.subr.mxu0 0.0
      %376 = vmatpush1.msra.mxu0 0.0
      %377 = vmatprep.subr.mxu0 0.0
      %378 = vmatpush1.msra.mxu0 0.0
      %379 = vmatprep.subr.mxu0 0.0
      %380 = vmatpush1.msra.mxu0 0.0
      %381 = vmatprep.mubr.f32.mxu0 0.0
      %382 = vmatmul.mubr.f32.gmra.mrb[0].mxu0 %v218
      %v383 = vpop.f32.mrb[0].mxu0
      %v384 = vadd.f32 %v214, %v383
      %v385 = vpop.f32.mrb[0].mxu0
      %386 = vmatprep.mubr.f32.mxu0 0.0
      %387 = vmatmul.mubr.f32.gmra.mrb[0].mxu0 %v221
      %v388 = vpop.f32.mrb[0].mxu0
      %v389 = vadd.f32 %v214, %v388
      %v390 = vpop.f32.mrb[0].mxu0
      %391 = vmatprep.mubr.f32.mxu0 0.0
      %392 = vmatmul.mubr.f32.gmra.mrb[0].mxu0 %v224
      %v393 = vpop.f32.mrb[0].mxu0
      %v394 = vadd.f32 %v214, %v393
      %v395 = vpop.f32.mrb[0].mxu0
      %396 = vmatprep.mubr.f32.mxu0 0.0
      %397 = vmatmul.mubr.f32.gmra.mrb[0].mxu0 %v227
      %v398 = vpop.f32.mrb[0].mxu0
      %v399 = vadd.f32 %v214, %v398
      %v400 = vpop.f32.mrb[0].mxu0
      %401 = vmatprep.mubr.f32.mxu0 0.0
      %402 = vmatmul.mubr.f32.gmra.mrb[0].mxu0 %v230
      %v403 = vpop.f32.mrb[0].mxu0
      %v404 = vadd.f32 %v214, %v403
      %v405 = vpop.f32.mrb[0].mxu0
      %406 = vmatprep.mubr.f32.mxu0 0.0
      %407 = vmatmul.mubr.f32.gmra.mrb[0].mxu0 %v233
      %v408 = vpop.f32.mrb[0].mxu0
      %v409 = vadd.f32 %v214, %v408
      %v410 = vpop.f32.mrb[0].mxu0
      %411 = vmatprep.mubr.f32.mxu0 0.0
      %412 = vmatmul.mubr.f32.gmra.mrb[0].mxu0 %v236
      %v413 = vpop.f32.mrb[0].mxu0
      %v414 = vadd.f32 %v214, %v413
      %v415 = vpop.f32.mrb[0].mxu0
      %416 = vmatprep.mubr.f32.mxu0 0.0
      %417 = vmatmul.mubr.f32.gmra.mrb[0].mxu0 %v239
      %v418 = vpop.f32.mrb[0].mxu0
      %v419 = vadd.f32 %v214, %v418
      %v420 = vpop.f32.mrb[0].mxu0
      %421 = vmatprep.mubr.f32.mxu0 0.0
      %422 = vmatmul.mubr.f32.gmra.mrb[0].mxu0 %v242
      %v423 = vpop.f32.mrb[0].mxu0
      %v424 = vadd.f32 %v214, %v423
      %v425 = vpop.f32.mrb[0].mxu0
      %426 = vmatprep.mubr.f32.mxu0 0.0
      %427 = vmatmul.mubr.f32.gmra.mrb[0].mxu0 %v245
      %v428 = vpop.f32.mrb[0].mxu0
      %v429 = vadd.f32 %v214, %v428
      %v430 = vpop.f32.mrb[0].mxu0
      %431 = vmatprep.mubr.f32.mxu0 0.0
      %432 = vmatmul.mubr.f32.gmra.mrb[0].mxu0 %v248
      %v433 = vpop.f32.mrb[0].mxu0
      %v434 = vadd.f32 %v214, %v433
      %v435 = vpop.f32.mrb[0].mxu0
      %436 = vmatprep.mubr.f32.mxu0 0.0
      %437 = vmatmul.mubr.f32.gmra.mrb[0].mxu0 %v251
      %v438 = vpop.f32.mrb[0].mxu0
      %v439 = vadd.f32 %v214, %v438
      %v440 = vpop.f32.mrb[0].mxu0
      %441 = vmatprep.mubr.f32.mxu0 0.0
      %442 = vmatmul.mubr.f32.gmra.mrb[0].mxu0 %v254
      %v443 = vpop.f32.mrb[0].mxu0
      %v444 = vadd.f32 %v214, %v443
      %v445 = vpop.f32.mrb[0].mxu0
      %446 = vmatprep.mubr.f32.mxu0 0.0
      %447 = vmatmul.mubr.f32.gmra.mrb[0].mxu0 %v257
      %v448 = vpop.f32.mrb[0].mxu0
      %v449 = vadd.f32 %v214, %v448
      %v450 = vpop.f32.mrb[0].mxu0
      %451 = vmatprep.mubr.f32.mxu0 0.0
      %452 = vmatmul.mubr.f32.gmra.mrb[0].mxu0 %v260
      %v453 = vpop.f32.mrb[0].mxu0
      %v454 = vadd.f32 %v214, %v453
      %v455 = vpop.f32.mrb[0].mxu0
      %456 = vmatprep.mubr.f32.mxu0 0.0
      %457 = vmatmul.mubr.f32.gmra.mrb[0].mxu0 %v263
      %v458 = vpop.f32.mrb[0].mxu0
      %v459 = vadd.f32 %v214, %v458
      %v460 = vpop.f32.mrb[0].mxu0
      %461 = vmatprep.mubr.f32.mxu0 0.0
      %462 = vmatmul.mubr.f32.gmra.mrb[0].mxu0 %v266
      %v463 = vpop.f32.mrb[0].mxu0
      %v464 = vadd.f32 %v214, %v463
      %v465 = vpop.f32.mrb[0].mxu0
      %466 = vmatprep.mubr.f32.mxu0 0.0
      %467 = vmatmul.mubr.f32.gmra.mrb[0].mxu0 %v269
      %v468 = vpop.f32.mrb[0].mxu0
      %v469 = vadd.f32 %v214, %v468
      %v470 = vpop.f32.mrb[0].mxu0
      %471 = vmatprep.mubr.f32.mxu0 0.0
      %472 = vmatmul.mubr.f32.gmra.mrb[0].mxu0 %v272
      %v473 = vpop.f32.mrb[0].mxu0
      %v474 = vadd.f32 %v214, %v473
      %v475 = vpop.f32.mrb[0].mxu0
      %476 = vmatprep.mubr.f32.mxu0 0.0
      %477 = vmatmul.mubr.f32.gmra.mrb[0].mxu0 %v275
      %v478 = vpop.f32.mrb[0].mxu0
      %v479 = vadd.f32 %v214, %v478
      %v480 = vpop.f32.mrb[0].mxu0
      %481 = vmatprep.mubr.f32.mxu0 0.0
      %482 = vmatmul.mubr.f32.gmra.mrb[0].mxu0 %v278
      %v483 = vpop.f32.mrb[0].mxu0
      %v484 = vadd.f32 %v214, %v483
      %v485 = vpop.f32.mrb[0].mxu0
      %486 = vmatprep.mubr.f32.mxu0 0.0
      %487 = vmatmul.mubr.f32.gmra.mrb[0].mxu0 %v281
      %v488 = vpop.f32.mrb[0].mxu0
      %v489 = vadd.f32 %v214, %v488
      %v490 = vpop.f32.mrb[0].mxu0
      %491 = vmatprep.mubr.f32.mxu0 0.0
      %492 = vmatmul.mubr.f32.gmra.mrb[0].mxu0 %v284
      %v493 = vpop.f32.mrb[0].mxu0
      %v494 = vadd.f32 %v214, %v493
      %v495 = vpop.f32.mrb[0].mxu0
      %496 = vmatprep.mubr.f32.mxu0 0.0
      %497 = vmatmul.mubr.f32.gmra.mrb[0].mxu0 %v287
      %v498 = vpop.f32.mrb[0].mxu0
      %v499 = vadd.f32 %v214, %v498
      %v500 = vpop.f32.mrb[0].mxu0
      %501 = vmatprep.mubr.f32.mxu0 0.0
      %502 = vmatmul.mubr.f32.gmra.mrb[0].mxu0 %v290
      %v503 = vpop.f32.mrb[0].mxu0
      %v504 = vadd.f32 %v214, %v503
      %v505 = vpop.f32.mrb[0].mxu0
      %506 = vmatprep.mubr.f32.mxu0 0.0
      %507 = vmatmul.mubr.f32.gmra.mrb[0].mxu0 %v293
      %v508 = vpop.f32.mrb[0].mxu0
      %v509 = vadd.f32 %v214, %v508
      %v510 = vpop.f32.mrb[0].mxu0
      %511 = vmatprep.mubr.f32.mxu0 0.0
      %512 = vmatmul.mubr.f32.gmra.mrb[0].mxu0 %v296
      %v513 = vpop.f32.mrb[0].mxu0
      %v514 = vadd.f32 %v214, %v513
      %v515 = vpop.f32.mrb[0].mxu0
      %516 = vmatprep.mubr.f32.mxu0 0.0
      %517 = vmatmul.mubr.f32.gmra.mrb[0].mxu0 %v299
      %v518 = vpop.f32.mrb[0].mxu0
      %v519 = vadd.f32 %v214, %v518
      %v520 = vpop.f32.mrb[0].mxu0
      %521 = vmatprep.mubr.f32.mxu0 0.0
      %522 = vmatmul.mubr.f32.gmra.mrb[0].mxu0 %v302
      %v523 = vpop.f32.mrb[0].mxu0
      %v524 = vadd.f32 %v214, %v523
      %v525 = vpop.f32.mrb[0].mxu0
      %526 = vmatprep.mubr.f32.mxu0 0.0
      %527 = vmatmul.mubr.f32.gmra.mrb[0].mxu0 %v305
      %v528 = vpop.f32.mrb[0].mxu0
      %v529 = vadd.f32 %v214, %v528
      %v530 = vpop.f32.mrb[0].mxu0
      %531 = vmatprep.mubr.f32.mxu0 0.0
      %532 = vmatmul.mubr.f32.gmra.mrb[0].mxu0 %v308
      %v533 = vpop.f32.mrb[0].mxu0
      %v534 = vadd.f32 %v214, %v533
      %v535 = vpop.f32.mrb[0].mxu0
      %536 = vmatprep.mubr.f32.mxu0 0.0
      %537 = vmatmul.mubr.f32.gmra.mrb[0].mxu0 %v311
      %v538 = vpop.f32.mrb[0].mxu0
      %v539 = vadd.f32 %v214, %v538
      %v540 = vpop.f32.mrb[0].mxu0
      %541 = vdwg.mxu0
      %v542 = vmul.f32 %v384, 0.1
      %v543 = vmul.f32 %v389, 0.1
      %v544 = vmul.f32 %v394, 0.1
      %v545 = vmul.f32 %v399, 0.1
      %v546 = vmul.f32 %v404, 0.1
      %v547 = vmul.f32 %v409, 0.1
      %v548 = vmul.f32 %v414, 0.1
      %v549 = vmul.f32 %v419, 0.1
      %v550 = vmul.f32 %v424, 0.1
      %v551 = vmul.f32 %v429, 0.1
      %v552 = vmul.f32 %v434, 0.1
      %v553 = vmul.f32 %v439, 0.1
      %v554 = vmul.f32 %v444, 0.1
      %v555 = vmul.f32 %v449, 0.1
      %v556 = vmul.f32 %v454, 0.1
      %v557 = vmul.f32 %v459, 0.1
      %v558 = vmul.f32 %v464, 0.1
      %v559 = vmul.f32 %v469, 0.1
      %v560 = vmul.f32 %v474, 0.1
      %v561 = vmul.f32 %v479, 0.1
      %v562 = vmul.f32 %v484, 0.1
      %v563 = vmul.f32 %v489, 0.1
      %v564 = vmul.f32 %v494, 0.1
      %v565 = vmul.f32 %v499, 0.1
      %v566 = vmul.f32 %v504, 0.1
      %v567 = vmul.f32 %v509, 0.1
      %v568 = vmul.f32 %v514, 0.1
      %v569 = vmul.f32 %v519, 0.1
      %v570 = vmul.f32 %v524, 0.1
      %v571 = vmul.f32 %v529, 0.1
      %v572 = vmul.f32 %v534, 0.1
      %v573 = vmul.f32 %v539, 0.1
      %v574 = vmax.f32 %v384, %v542
      %v575 = vmax.f32 %v389, %v543
      %v576 = vmax.f32 %v394, %v544
      %v577 = vmax.f32 %v399, %v545
      %v578 = vmax.f32 %v404, %v546
      %v579 = vmax.f32 %v409, %v547
      %v580 = vmax.f32 %v414, %v548
      %v581 = vmax.f32 %v419, %v549
      %v582 = vmax.f32 %v424, %v550
      %v583 = vmax.f32 %v429, %v551
      %v584 = vmax.f32 %v434, %v552
      %v585 = vmax.f32 %v439, %v553
      %v586 = vmax.f32 %v444, %v554
      %v587 = vmax.f32 %v449, %v555
      %v588 = vmax.f32 %v454, %v556
      %v589 = vmax.f32 %v459, %v557
      %v590 = vmax.f32 %v464, %v558
      %v591 = vmax.f32 %v469, %v559
      %v592 = vmax.f32 %v474, %v560
      %v593 = vmax.f32 %v479, %v561
      %v594 = vmax.f32 %v484, %v562
      %v595 = vmax.f32 %v489, %v563
      %v596 = vmax.f32 %v494, %v564
      %v597 = vmax.f32 %v499, %v565
      %v598 = vmax.f32 %v504, %v566
      %v599 = vmax.f32 %v509, %v567
      %v600 = vmax.f32 %v514, %v568
      %v601 = vmax.f32 %v519, %v569
      %v602 = vmax.f32 %v524, %v570
      %v603 = vmax.f32 %v529, %v571
      %v604 = vmax.f32 %v534, %v572
      %v605 = vmax.f32 %v539, %v573
      %vm606 = vcmask 130048
      %607 = vst.msk [vmem:[%s174] sm:$0xff] %vm606, %v574
      %608 = vst.msk [vmem:[%s174 + $0x8] sm:$0xff] %vm606, %v575
      %609 = vst.msk [vmem:[%s174 + $0x20] sm:$0xff] %vm606, %v576
      %610 = vst.msk [vmem:[%s174 + $0x28] sm:$0xff] %vm606, %v577
      %611 = vst.msk [vmem:[%s174 + $0x40] sm:$0xff] %vm606, %v578
      %612 = vst.msk [vmem:[%s174 + $0x48] sm:$0xff] %vm606, %v579
      %613 = vst.msk [vmem:[%s174 + $0x60] sm:$0xff] %vm606, %v580
      %614 = vst.msk [vmem:[%s174 + $0x68] sm:$0xff] %vm606, %v581
      %615 = vst.msk [vmem:[%s174 + $0x80] sm:$0xff] %vm606, %v582
      %616 = vst.msk [vmem:[%s174 + $0x88] sm:$0xff] %vm606, %v583
      %617 = vst.msk [vmem:[%s174 + $0xa0] sm:$0xff] %vm606, %v584
      %618 = vst.msk [vmem:[%s174 + $0xa8] sm:$0xff] %vm606, %v585
      %619 = vst.msk [vmem:[%s174 + $0xc0] sm:$0xff] %vm606, %v586
      %620 = vst.msk [vmem:[%s174 + $0xc8] sm:$0xff] %vm606, %v587
      %621 = vst.msk [vmem:[%s174 + $0xe0] sm:$0xff] %vm606, %v588
      %622 = vst.msk [vmem:[%s174 + $0xe8] sm:$0xff] %vm606, %v589
      %623 = vst.msk [vmem:[%s174 + $0x100] sm:$0xff] %vm606, %v590
      %624 = vst.msk [vmem:[%s174 + $0x108] sm:$0xff] %vm606, %v591
      %625 = vst.msk [vmem:[%s174 + $0x120] sm:$0xff] %vm606, %v592
      %626 = vst.msk [vmem:[%s174 + $0x128] sm:$0xff] %vm606, %v593
      %627 = vst.msk [vmem:[%s174 + $0x140] sm:$0xff] %vm606, %v594
      %628 = vst.msk [vmem:[%s174 + $0x148] sm:$0xff] %vm606, %v595
      %629 = vst.msk [vmem:[%s174 + $0x160] sm:$0xff] %vm606, %v596
      %630 = vst.msk [vmem:[%s174 + $0x168] sm:$0xff] %vm606, %v597
      %631 = vst.msk [vmem:[%s174 + $0x180] sm:$0xff] %vm606, %v598
      %632 = vst.msk [vmem:[%s174 + $0x188] sm:$0xff] %vm606, %v599
      %633 = vst.msk [vmem:[%s174 + $0x1a0] sm:$0xff] %vm606, %v600
      %634 = vst.msk [vmem:[%s174 + $0x1a8] sm:$0xff] %vm606, %v601
      %635 = vst.msk [vmem:[%s174 + $0x1c0] sm:$0xff] %vm606, %v602
      %636 = vst.msk [vmem:[%s174 + $0x1c8] sm:$0xff] %vm606, %v603
      %637 = vst.msk [vmem:[%s174 + $0x1e0] sm:$0xff] %vm606, %v604
      %638 = vst.msk [vmem:[%s174 + $0x1e8] sm:$0xff] %vm606, %v605
      %639 = vst.msk [vmem:[%s174 + $0x10] sm:$0xff] %vm606, %v574
      %640 = vst.msk [vmem:[%s174 + $0x18] sm:$0xff] %vm606, %v575
      %641 = vst.msk [vmem:[%s174 + $0x30] sm:$0xff] %vm606, %v576
      %642 = vst.msk [vmem:[%s174 + $0x38] sm:$0xff] %vm606, %v577
      %643 = vst.msk [vmem:[%s174 + $0x50] sm:$0xff] %vm606, %v578
      %644 = vst.msk [vmem:[%s174 + $0x58] sm:$0xff] %vm606, %v579
      %645 = vst.msk [vmem:[%s174 + $0x70] sm:$0xff] %vm606, %v580
      %646 = vst.msk [vmem:[%s174 + $0x78] sm:$0xff] %vm606, %v581
      %647 = vst.msk [vmem:[%s174 + $0x90] sm:$0xff] %vm606, %v582
      %648 = vst.msk [vmem:[%s174 + $0x98] sm:$0xff] %vm606, %v583
      %649 = vst.msk [vmem:[%s174 + $0xb0] sm:$0xff] %vm606, %v584
      %650 = vst.msk [vmem:[%s174 + $0xb8] sm:$0xff] %vm606, %v585
      %651 = vst.msk [vmem:[%s174 + $0xd0] sm:$0xff] %vm606, %v586
      %652 = vst.msk [vmem:[%s174 + $0xd8] sm:$0xff] %vm606, %v587
      %653 = vst.msk [vmem:[%s174 + $0xf0] sm:$0xff] %vm606, %v588
      %654 = vst.msk [vmem:[%s174 + $0xf8] sm:$0xff] %vm606, %v589
      %655 = vst.msk [vmem:[%s174 + $0x110] sm:$0xff] %vm606, %v590
      %656 = vst.msk [vmem:[%s174 + $0x118] sm:$0xff] %vm606, %v591
      %657 = vst.msk [vmem:[%s174 + $0x130] sm:$0xff] %vm606, %v592
      %658 = vst.msk [vmem:[%s174 + $0x138] sm:$0xff] %vm606, %v593
      %659 = vst.msk [vmem:[%s174 + $0x150] sm:$0xff] %vm606, %v594
      %660 = vst.msk [vmem:[%s174 + $0x158] sm:$0xff] %vm606, %v595
      %661 = vst.msk [vmem:[%s174 + $0x170] sm:$0xff] %vm606, %v596
      %662 = vst.msk [vmem:[%s174 + $0x178] sm:$0xff] %vm606, %v597
      %663 = vst.msk [vmem:[%s174 + $0x190] sm:$0xff] %vm606, %v598
      %664 = vst.msk [vmem:[%s174 + $0x198] sm:$0xff] %vm606, %v599
      %665 = vst.msk [vmem:[%s174 + $0x1b0] sm:$0xff] %vm606, %v600
      %666 = vst.msk [vmem:[%s174 + $0x1b8] sm:$0xff] %vm606, %v601
      %667 = vst.msk [vmem:[%s174 + $0x1d0] sm:$0xff] %vm606, %v602
      %668 = vst.msk [vmem:[%s174 + $0x1d8] sm:$0xff] %vm606, %v603
      %669 = vst.msk [vmem:[%s174 + $0x1f0] sm:$0xff] %vm606, %v604
      %670 = vst.msk [vmem:[%s174 + $0x1f8] sm:$0xff] %vm606, %v605
      %s671 = smul.u32 16, %s14
      %p672 = scmp.lt.s32.totalorder %s671, 31
      %s673 = scalar_select %p672, %s671, 31
      %s674 = smul.addr %s673, 4
      %s675 = smul.addr %s674, 8
      %s676 = scalar_lea.vmem %s3, %s675
      // Predicated region
      $region33: #{tpu_custom_call.1} parent=31 // pred_check
        %p677 = pneg %p100
      $region34: #{tpu_custom_call.1} parent=31 // pred_check_branch
        %679 = sbr.rel (%p677) target = $region36
      $region35: #{tpu_custom_call.1} parent=31 // pred_region
        %s680 = smul.u32 16, %s14
      $region36: #{tpu_custom_call.1} parent=31 // pred_fallthru
        _
    $region32: #{tpu_custom_call.1} parent=5 // pred_fallthru
      _
    %p681 = scmp.le.s32.totalorder 2, %s9
    // Predicated region
    $region37: #{tpu_custom_call.1} parent=5 // pred_check
      %p682 = pneg %p681
    $region38: #{tpu_custom_call.1} parent=5 // pred_check_branch
      %684 = sbr.rel (%p682) target = $region40
    $region39: #{tpu_custom_call.1} parent=5 // pred_region
      %s685 = ssub.s32 %s9, 2
      // Predicated region
      $region41: #{tpu_custom_call.1} parent=39 // pred_check
        %p686 = pneg %p106
      $region42: #{tpu_custom_call.1} parent=39 // pred_check_branch
        %688 = sbr.rel (%p686) target = $region44
      $region43: #{tpu_custom_call.1} parent=39 // pred_region
        %s689 = smul.u32 16, %s15
        %p690 = scmp.lt.s32.totalorder %s689, 31
        %s691 = scalar_select %p690, %s689, 31
        %s692 = smul.addr %s691, 4
        %s693 = smul.addr %s692, 8
        %s694 = scalar_lea.vmem %s3, %s693
      $region44: #{tpu_custom_call.1} parent=39 // pred_fallthru
        _
    $region40: #{tpu_custom_call.1} parent=5 // pred_fallthru
      _
  $region6: #{tpu_custom_call.1} parent=0 // loop_footer
    %s13 = sadd.s32 1, %s9
  $region7: #{tpu_custom_call.1} parent=0 // loop_footer_branch
    %8 = sbr.rel target = $region3
  $region8: #{tpu_custom_call.1} parent=0 // loop_exit
    _

</llo_original>
